<compile_context>
chip_gen: v5e
topology: v5e:2x2
jax: 0.10.0
libtpu: 0.0.40
codegen_flags: <defaults>
</compile_context>

<pallas_src>
import jax
import jax.numpy as jnp
from jax.experimental import pallas as pl
from jax.experimental.pallas import tpu as pltpu

_LANES = 128
_TARGET_BLOCK_BYTES = 2 * 1024 * 1024  # fallback copy: ~2 MiB/block, safe on all gens


# --------------------------------------------------------------------------
# Primary path: zero-copy identity via output/input aliasing (no DMA at all).
# --------------------------------------------------------------------------
def _lrp_selu_alias_kernel(r_ref, o_ref):
    # Output buffer aliases the input buffer; there is nothing to move.
    # `touch` only pins the read/write dependency so the aliased output is
    # considered produced by this kernel.
    del r_ref
    pltpu.touch(o_ref)


def _identity_alias(r):
    return pl.pallas_call(
        _lrp_selu_alias_kernel,
        out_shape=jax.ShapeDtypeStruct(r.shape, r.dtype),
        in_specs=[pl.BlockSpec(memory_space=pl.ANY)],
        out_specs=pl.BlockSpec(memory_space=pl.ANY),
        input_output_aliases={0: 0},
        compiler_params=pltpu.CompilerParams(has_side_effects=True),
        cost_estimate=pl.CostEstimate(flops=0, transcendentals=0, bytes_accessed=0),
    )(r)


# --------------------------------------------------------------------------
# Fallback path: lane-dense tiled copy (only used if the alias path fails).
# --------------------------------------------------------------------------
def _lrp_selu_copy_kernel(r_ref, o_ref):
    o_ref[...] = r_ref[...]


def _sublane_for_dtype(dtype) -> int:
    itemsize = jnp.dtype(dtype).itemsize
    return {4: 8, 2: 16, 1: 32}.get(itemsize, 8)


def _identity_copy(r):
    orig_shape = r.shape
    dtype = r.dtype
    itemsize = jnp.dtype(dtype).itemsize
    n = r.size
    sublane = _sublane_for_dtype(dtype)

    # Lane-dense (rows, 128) view; pad only up to the next (sublane, 128)
    # multiple (a no-op for typical conv activation sizes), never to a
    # block-size multiple.
    rows = pl.cdiv(n, _LANES)
    rows = pl.cdiv(rows, sublane) * sublane
    padded_n = rows * _LANES

    r_flat = r.reshape(-1)
    needs_pad = padded_n != n
    if needs_pad:
        r_flat = jnp.pad(r_flat, (0, padded_n - n))
    r2d = r_flat.reshape(rows, _LANES)

    max_block_rows = max(
        sublane,
        (_TARGET_BLOCK_BYTES // (_LANES * itemsize)) // sublane * sublane,
    )
    block_rows = min(max_block_rows, rows)
    grid = (pl.cdiv(rows, block_rows),)  # ragged last block handled by Pallas

    out2d = pl.pallas_call(
        _lrp_selu_copy_kernel,
        out_shape=jax.ShapeDtypeStruct((rows, _LANES), dtype),
        grid=grid,
        in_specs=[pl.BlockSpec((block_rows, _LANES), lambda i: (i, 0))],
        out_specs=pl.BlockSpec((block_rows, _LANES), lambda i: (i, 0)),
        compiler_params=pltpu.CompilerParams(
            dimension_semantics=("parallel",),
            vmem_limit_bytes=32 * 1024 * 1024,
        ),
        cost_estimate=pl.CostEstimate(
            flops=0, transcendentals=0, bytes_accessed=2 * n * itemsize
        ),
    )(r2d)

    out = out2d.reshape(-1)
    if needs_pad:
        out = out[:n]
    return out.reshape(orig_shape)


# --------------------------------------------------------------------------
# Public wrapper (matches LRPSELU.forward(a, r) -> r).
# --------------------------------------------------------------------------
_ALIAS_PATH_WORKS = None  # lazily determined: None -> untried, True/False


def lrp_selu_forward(a, r):
    """Pallas implementation of LRPSELU.forward(a, r) -> r.

    `a` matches the PyTorch module signature but is intentionally not fed to
    the kernel (this LRP rule ignores it in forward), so it costs no HBM
    traffic.
    """
    assert a.shape == r.shape, "activation and relevance must share a shape"
    del a

    global _ALIAS_PATH_WORKS
    if _ALIAS_PATH_WORKS:
        return _identity_alias(r)
    if _ALIAS_PATH_WORKS is None:
        try:
            out = jax.block_until_ready(_identity_alias(r))
            _ALIAS_PATH_WORKS = True
            return out
        except Exception:
            # Aliased no-op did not lower/run on this toolchain; use the lean
            # tiled-copy kernel instead.
            _ALIAS_PATH_WORKS = False
    return _identity_copy(r)


if __name__ == "__main__":
    key = jax.random.PRNGKey(0)
    ka, kr, ka2, kr2 = jax.random.split(key, 4)

    # Small NCHW shapes consistent with a conv-net activation / relevance pair.
    B, C, H, W = 2, 4, 16, 16
    a = jax.random.normal(ka, (B, C, H, W), dtype=jnp.float32)
    r = jax.random.normal(kr, (B, C, H, W), dtype=jnp.float32)

    out = jax.block_until_ready(lrp_selu_forward(a, r))
    assert out.shape == r.shape
    assert out.dtype == r.dtype
    assert bool(jnp.all(out == r))

    # Also exercise a non-128-divisible shape.
    a2 = jax.random.normal(ka2, (2, 3, 5, 7), dtype=jnp.float32)
    r2 = jax.random.normal(kr2, (2, 3, 5, 7), dtype=jnp.float32)
    out2 = jax.block_until_ready(lrp_selu_forward(a2, r2))
    assert out2.shape == r2.shape
    assert out2.dtype == r2.dtype
    assert bool(jnp.all(out2 == r2))

    print("KERNEL_OK")
</pallas_src>

<mosaic_0001>
module attributes {stable_mosaic.version = 11 : i64} {
  func.func @_lrp_selu_alias_kernel(%arg0: memref<2x4x16x16xf32, #tpu.memory_space<any>>, %arg1: memref<2x4x16x16xf32, #tpu.memory_space<any>>) attributes {dimension_semantics = [], scalar_prefetch = 0 : i64, scratch_operands = 0 : i64, tpu.core_type = #tpu.core_type<tc>} {
    return
  }
}

module attributes {stable_mosaic.version = 11 : i64} {
  func.func @_lrp_selu_copy_kernel(%arg0: i32, %arg1: memref<16x128xf32, #tpu.memory_space<vmem>>, %arg2: memref<16x128xf32, #tpu.memory_space<vmem>>) attributes {dimension_semantics = [#tpu.dimension_semantics<parallel>], iteration_bounds = array<i64: 1>, scalar_prefetch = 0 : i64, scratch_operands = 0 : i64, tpu.core_type = #tpu.core_type<tc>, window_params = [{transform_indices = @transform_0, window_bounds = array<i64: 16, 128>}, {transform_indices = @transform_1, window_bounds = array<i64: 16, 128>}]} {
    %c0 = arith.constant 0 : index
    %c0_0 = arith.constant 0 : index
    %0 = vector.load %arg1[%c0, %c0_0] : memref<16x128xf32, #tpu.memory_space<vmem>>, vector<16x128xf32>
    %c0_1 = arith.constant 0 : index
    %c0_2 = arith.constant 0 : index
    %1 = vector.load %arg2[%c0_1, %c0_2] : memref<16x128xf32, #tpu.memory_space<vmem>>, vector<16x128xf32>
    tpu.vector_store %arg2[%c0_1, %c0_2], %0 {strides = array<i32>} : memref<16x128xf32, #tpu.memory_space<vmem>>, vector<16x128xf32>,
    return
  }
  func.func @transform_0(%arg0: i32) -> (i32, i32) {
    %c0_i32 = arith.constant 0 : i32
    %c0_i32_0 = arith.constant 0 : i32
    return %arg0, %c0_i32 : i32, i32
  }
  func.func @transform_1(%arg0: i32) -> (i32, i32) {
    %c0_i32 = arith.constant 0 : i32
    %c0_i32_0 = arith.constant 0 : i32
    return %arg0, %c0_i32 : i32, i32
  }
}

</mosaic_0001>

<llo_original>
// kernel: tpu_custom_call.1
$region0: #{tpu_custom_call.1}
  #allocation0 [shape = 'u32[]', space=smem, size = 0x4, offset = 0x4, fixed_abs, tag = 'smem constant byte address 0x4 - core index']
  #allocation1 [shape = 'u32[72,128]{1,0:T(1,128)}', space=vmem, size = 0x9000, scoped, tag = 'internal scratch']
  %s0 = inlined_call_operand.hbm [shape: f32[2,4,16,16], index: 0, kind: input, shape index: {}, may-alias: {0,1}]
  %s1 = inlined_call_operand.hbm [shape: f32[2,4,16,16], index: 1, kind: output, shape index: {}, may-alias: {0,1}]
  %s2 = sld [smem:[#allocation0]]
  $region2: #{tpu_custom_call.1} parent=0
    _
  %s4 = ssub.s32 1, %s2
  %s5 = scalar_select 0, %s4, %s2

// kernel: tpu_custom_call.1
$region0: #{tpu_custom_call.1}
  #allocation0 [shape = 'u32[]', space=smem, size = 0x4, offset = 0x4, fixed_abs, tag = 'smem constant byte address 0x4 - core index']
  #allocation1 [shape = 'u32[72,128]{1,0:T(1,128)}', space=vmem, size = 0x9000, scoped, tag = 'internal scratch']
  %s0 = inlined_call_operand.hbm [shape: f32[16,128], index: 0, kind: input, shape index: {}]
  %s1 = inlined_call_operand.hbm [shape: f32[16,128], index: 1, kind: output, shape index: {}]
  %s2 = sld [smem:[#allocation0]]
  $region18: #{tpu_custom_call.1} parent=0
    _
  %s4 = ssub.s32 1, %s2
  %s5 = scalar_select 0, %s4, %s2
  $region1: #{tpu_custom_call.1} parent=0
    #allocation2 [shape = 'u8[8192]{0}', space=vmem, size = 0x2000, scoped, tag = 'input window, operand 0, single buffered']
    #allocation3 [shape = 's32[1]{0}', space=sflag, size = 0x4, scoped, tag = 'scoped memory for tpu_custom_call.1']
    #allocation4 [shape = 's32[1]{0}', space=sflag, size = 0x4, scoped, tag = 'scoped memory for tpu_custom_call.1']
    #allocation5 [shape = 'u8[8192]{0}', space=vmem, size = 0x2000, scoped, tag = 'output window, operand 0, single buffered']
    %6 = vsyncpa [#allocation3], 0
    %7 = vsyncpa [#allocation4], 0
    // Predicated region
    $region2: #{tpu_custom_call.1} parent=1 // pred_check
      _
    $region3: #{tpu_custom_call.1} parent=1 // pred_check_branch
      %9 = sbr.rel (0) target = $region5
    $region4: #{tpu_custom_call.1} parent=1 // pred_region
      %11 = vsyncadd [#allocation3], 0
      %s12 = sshll.u32 %s0, 4
      %s13 = int_to_ptr.hbm [resolvable:$true] %s12
      %s14 = sshll.u32 [#allocation2], 4
      %s15 = int_to_ptr.vmem [resolvable:$true] %s14
      %20 = dma.hbm_to_vmem [thread:$0]  %s13, 256, %s15, [#allocation3], 128, 128, 8
    $region5: #{tpu_custom_call.1} parent=1 // pred_fallthru
      _
    // Predicated region
    $region6: #{tpu_custom_call.1} parent=1 // pred_check
      _
    $region7: #{tpu_custom_call.1} parent=1 // pred_check_branch
      %22 = sbr.rel (0) target = $region9
    $region8: #{tpu_custom_call.1} parent=1 // pred_region
      %24 = dma.done [#allocation3], 256
    $region9: #{tpu_custom_call.1} parent=1 // pred_fallthru
      _
    %v25 = vld [vmem:[#allocation2] sm:$0xff]
    %v26 = vld [vmem:[#allocation2 + $0x8] sm:$0xff]
    %27 = vst [vmem:[#allocation5] sm:$0xff] %v25
    %28 = vst [vmem:[#allocation5 + $0x8] sm:$0xff] %v26
    // Predicated region
    $region10: #{tpu_custom_call.1} parent=1 // pred_check
      _
    $region11: #{tpu_custom_call.1} parent=1 // pred_check_branch
      %30 = sbr.rel (0) target = $region13
    $region12: #{tpu_custom_call.1} parent=1 // pred_region
      %32 = vsyncadd [#allocation4], 0
      %s33 = sshll.u32 [#allocation5], 4
      %s34 = int_to_ptr.vmem [resolvable:$true] %s33
      %s35 = sshll.u32 %s1, 4
      %s36 = int_to_ptr.hbm [resolvable:$true] %s35
      %41 = dma.vmem_to_hbm [thread:$0]  %s34, 256, %s36, [#allocation4], 128, 128, 8
    $region13: #{tpu_custom_call.1} parent=1 // pred_fallthru
      _
    // Predicated region
    $region14: #{tpu_custom_call.1} parent=1 // pred_check
      _
    $region15: #{tpu_custom_call.1} parent=1 // pred_check_branch
      %43 = sbr.rel (0) target = $region17
    $region16: #{tpu_custom_call.1} parent=1 // pred_region
      %45 = dma.done [#allocation4], 256
    $region17: #{tpu_custom_call.1} parent=1 // pred_fallthru
      _
    %46 = vsyncpa [#allocation3], 1
    %47 = vsyncpa [#allocation4], 1

</llo_original>
